<compile_context>
chip_gen: v5e
topology: v5e:2x2
jax: 0.10.0
libtpu: 0.0.40
codegen_flags: <defaults>
</compile_context>

<pallas_src>
import functools
import math

import jax
import jax.numpy as jnp
from jax import lax
from jax.experimental import pallas as pl
from jax.experimental.pallas import tpu as pltpu


def _round_up(x: int, m: int) -> int:
    return ((x + m - 1) // m) * m


def _vmem_capacity_bytes() -> int:
    """Per-core VMEM capacity; conservative fallback if the query fails."""
    try:
        return int(pltpu.get_tpu_info().vmem_capacity_bytes)
    except Exception:
        return 64 * 2**20  # v7x per-TensorCore (most restrictive generation)


# --------------------------------------------------------------------------- #
# Resident-table kernel: table lives in VMEM, gather = dynamic vector loads.
# --------------------------------------------------------------------------- #
def _embed_resident_kernel(ids_ref, table_ref, out_ref, *, scale, tokens_per_step):
    """ids_ref: SMEM (N_pad,) token ids; table_ref: (V, D) VMEM; out_ref: (T, D)."""
    T = tokens_per_step
    base = pl.program_id(0) * T
    num_groups = T // 8

    def group(g, carry):
        start = pl.multiple_of(g * 8, 8)          # sublane-aligned store offset
        rows = []
        for r in range(8):                        # small static unroll (8 rows)
            tok = ids_ref[base + start + r]       # scalar read from SMEM
            rows.append(table_ref[pl.ds(tok, 1), :])   # dynamic (1, D) row load
        tile = jnp.concatenate(rows, axis=0)      # (8, D)
        out_ref[pl.ds(start, 8), :] = (
            tile.astype(jnp.float32) * scale
        ).astype(out_ref.dtype)                   # dense aligned (8, D) store
        return carry

    lax.fori_loop(0, num_groups, group, 0, unroll=min(4, num_groups))


# --------------------------------------------------------------------------- #
# Streaming kernel: table stays in HBM; per-row DMAs double-buffered across
# grid steps (prefetch step i+1 while finishing step i).
# --------------------------------------------------------------------------- #
def _embed_stream_kernel(ids_ref, table_hbm, out_ref, buf_ref, sem,
                         *, scale, tokens_per_step):
    """buf_ref: (2, T, D) VMEM gather slots; sem: DMA semaphore per slot."""
    T = tokens_per_step
    i = pl.program_id(0)
    n = pl.num_programs(0)

    def issue_rows(step, slot):
        base = step * T

        def body(t, carry):
            tok = ids_ref[base + t]               # next-step ids already in SMEM
            pltpu.make_async_copy(
                table_hbm.at[pl.ds(tok, 1), :],   # one embedding row in HBM
                buf_ref.at[slot, pl.ds(t, 1), :], # its slot in the gather tile
                sem.at[slot],
            ).start()
            return carry

        lax.fori_loop(0, T, body, 0, unroll=8)

    # Prime this step's slot on the very first step only.
    @pl.when(i == 0)
    def _():
        issue_rows(0, 0)

    # Prefetch the NEXT step's rows into the other slot before any wait,
    # so its HBM latency overlaps this step's wait + writeback.
    @pl.when(i + 1 < n)
    def _():
        issue_rows(i + 1, (i + 1) % 2)

    # Wait for this step's T row copies (one row-sized wait per copy).
    slot = i % 2

    def wait_one(t, carry):
        pltpu.make_async_copy(
            table_hbm.at[pl.ds(0, 1), :],
            buf_ref.at[slot, pl.ds(0, 1), :],
            sem.at[slot],
        ).wait()
        return carry

    lax.fori_loop(0, T, wait_one, 0, unroll=8)

    # One dense (T, D) scaled store; pipeline writes the whole tile to HBM.
    out_ref[...] = (buf_ref[slot].astype(jnp.float32) * scale).astype(out_ref.dtype)


# --------------------------------------------------------------------------- #
# Wrapper
# --------------------------------------------------------------------------- #
def embedder_forward(
    tokens: jax.Array,
    table: jax.Array,
    *,
    tokens_per_step: int = 256,
    resident_table_max_bytes: int | None = None,   # None => derive from VMEM size
    force_stream: bool = False,
    out_dtype=None,
) -> jax.Array:
    """Equivalent of Embedder.forward: lut(tokens) * sqrt(d_model)."""
    B, S = tokens.shape
    V, D = table.shape
    N = B * S
    scale = math.sqrt(D)
    out_dtype = table.dtype if out_dtype is None else jnp.dtype(out_dtype)

    # Tokens handled per grid step: multiple of 8; for small N shrink so there
    # are >= 2 chunks (lets v7x's two TensorCores both get work).
    T = int(tokens_per_step)
    if N < 2 * T:
        T = -(-N // 2)                        # ceil(N / 2)
    T = max(8, _round_up(T, 8))
    N_pad = _round_up(N, T)
    num_steps = N_pad // T

    # Clamp ids (OOB-id safety; divergence from nn.Embedding which would error)
    # and pad to a multiple of T with id 0 (padding rows are sliced off below).
    flat_ids = jnp.clip(tokens.reshape(N).astype(jnp.int32), 0, V - 1)
    if N_pad != N:
        flat_ids = jnp.concatenate(
            [flat_ids, jnp.zeros((N_pad - N,), dtype=jnp.int32)]
        )

    itemsize = jnp.dtype(table.dtype).itemsize
    out_itemsize = jnp.dtype(out_dtype).itemsize
    table_bytes = V * D * itemsize
    tile_in_bytes = T * D * itemsize
    tile_out_bytes = T * D * out_itemsize
    margin = 2 * 2**20

    # Generation-aware residency decision (v7x: 64 MiB/TC, v5e/v6e: 128 MiB).
    vmem_cap = _vmem_capacity_bytes()
    # Table counted twice: default pipeline double-buffers even constant-index
    # blocks (it still only fetches once).
    resident_need = 2 * table_bytes + 2 * tile_out_bytes + margin
    if resident_table_max_bytes is None:
        resident_ok = resident_need <= int(0.8 * vmem_cap)
    else:
        resident_ok = table_bytes <= int(resident_table_max_bytes)
    resident = (not force_stream) and resident_ok

    if resident:
        kernel = functools.partial(
            _embed_resident_kernel, scale=scale, tokens_per_step=T
        )
        in_specs = [pl.BlockSpec((V, D), lambda i, ids: (0, 0))]
        scratch_shapes = []
        dims = ("parallel",)                   # chunks are independent
        vmem_need = resident_need
    else:
        kernel = functools.partial(
            _embed_stream_kernel, scale=scale, tokens_per_step=T
        )
        in_specs = [pl.BlockSpec(memory_space=pl.ANY)]   # table stays in HBM
        scratch_shapes = [
            pltpu.VMEM((2, T, D), table.dtype),          # double-buffered gather
            pltpu.SemaphoreType.DMA((2,)),               # one DMA sem per slot
        ]
        dims = ("arbitrary",)                  # cross-step prefetch => sequential
        vmem_need = 2 * tile_in_bytes + 2 * tile_out_bytes + margin

    vmem_limit = int(max(16 * 2**20,
                         min(vmem_cap - 2 * 2**20, vmem_need * 3 // 2)))

    out_flat = pl.pallas_call(
        kernel,
        out_shape=jax.ShapeDtypeStruct((N_pad, D), out_dtype),
        grid_spec=pltpu.PrefetchScalarGridSpec(
            num_scalar_prefetch=1,             # flat_ids land in SMEM
            grid=(num_steps,),                 # one chunk of T tokens per step
            in_specs=in_specs,
            out_specs=pl.BlockSpec((T, D), lambda i, ids: (i, 0)),
            scratch_shapes=scratch_shapes,
        ),
        compiler_params=pltpu.CompilerParams(
            dimension_semantics=dims,
            vmem_limit_bytes=vmem_limit,
        ),
    )(flat_ids, table)

    return out_flat[:N].reshape(B, S, D)


if __name__ == "__main__":
    # Small, deterministic setup consistent with the module:
    #   batch=2, seq=8, vocab_size=64, d_model=128 (lane-aligned).
    B, S = 2, 8
    VOCAB, D_MODEL = 64, 128

    key = jax.random.PRNGKey(0)
    k_tab, k_tok = jax.random.split(key)

    # nn.Embedding default init is N(0, 1).
    table = jax.random.normal(k_tab, (VOCAB, D_MODEL), dtype=jnp.float32)
    tokens = jax.random.randint(k_tok, (B, S), 0, VOCAB, dtype=jnp.int32)

    # Pure-JAX reference.
    ref = jnp.take(table, tokens.reshape(-1), axis=0).reshape(B, S, D_MODEL)
    ref = ref * math.sqrt(D_MODEL)

    # Path 1: resident-table variant (tiny table => VMEM-resident gather).
    out = jax.block_until_ready(embedder_forward(tokens, table))
    assert out.shape == (B, S, D_MODEL)
    assert out.dtype == jnp.float32
    assert jnp.allclose(out, ref, atol=1e-6, rtol=1e-6)

    # Path 2: HBM-streaming variant (fallback for tables that do not fit VMEM),
    # forced here to verify the double-buffered gather on the same inputs.
    out_stream = jax.block_until_ready(
        embedder_forward(tokens, table, force_stream=True)
    )
    assert jnp.allclose(out_stream, ref, atol=1e-6, rtol=1e-6)

    print("KERNEL_OK")
</pallas_src>

<mosaic_0001>
module attributes {stable_mosaic.version = 11 : i64} {
  func.func @_embed_resident_kernel(%arg0: i32, %arg1: memref<16xi32, #tpu.memory_space<smem>>, %arg2: memref<64x128xf32, #tpu.memory_space<vmem>>, %arg3: memref<8x128xf32, #tpu.memory_space<vmem>>) attributes {dimension_semantics = [#tpu.dimension_semantics<parallel>], iteration_bounds = array<i64: 2>, scalar_prefetch = 1 : i64, scratch_operands = 0 : i64, tpu.core_type = #tpu.core_type<tc>, window_params = [{pipeline_mode = #tpu.pipeline_mode<synchronous>, transform_indices = @transform_0, window_bounds = array<i64: 64, 128>}, {transform_indices = @transform_1, window_bounds = array<i64: 8, 128>}]} {
    %c8_i32 = arith.constant 8 : i32
    %0 = arith.muli %arg0, %c8_i32 : i32
    %c0_i32 = arith.constant 0 : i32
    %c8_i32_0 = arith.constant 8 : i32
    %1 = arith.muli %c0_i32, %c8_i32_0 : i32
    %2 = tpu.assume_multiple %1, 8 : i32
    %3 = arith.addi %0, %2 : i32
    %c0_i32_1 = arith.constant 0 : i32
    %4 = arith.addi %3, %c0_i32_1 : i32
    %5 = arith.index_cast %4 : i32 to index
    %6 = memref.load %arg1[%5] : memref<16xi32, #tpu.memory_space<smem>>
    %7 = arith.index_cast %6 : i32 to index
    %c0 = arith.constant 0 : index
    %8 = vector.load %arg2[%7, %c0] : memref<64x128xf32, #tpu.memory_space<vmem>>, vector<1x128xf32>
    %9 = arith.addi %0, %2 : i32
    %c1_i32 = arith.constant 1 : i32
    %10 = arith.addi %9, %c1_i32 : i32
    %11 = arith.index_cast %10 : i32 to index
    %12 = memref.load %arg1[%11] : memref<16xi32, #tpu.memory_space<smem>>
    %13 = arith.index_cast %12 : i32 to index
    %c0_2 = arith.constant 0 : index
    %14 = vector.load %arg2[%13, %c0_2] : memref<64x128xf32, #tpu.memory_space<vmem>>, vector<1x128xf32>
    %15 = arith.addi %0, %2 : i32
    %c2_i32 = arith.constant 2 : i32
    %16 = arith.addi %15, %c2_i32 : i32
    %17 = arith.index_cast %16 : i32 to index
    %18 = memref.load %arg1[%17] : memref<16xi32, #tpu.memory_space<smem>>
    %19 = arith.index_cast %18 : i32 to index
    %c0_3 = arith.constant 0 : index
    %20 = vector.load %arg2[%19, %c0_3] : memref<64x128xf32, #tpu.memory_space<vmem>>, vector<1x128xf32>
    %21 = arith.addi %0, %2 : i32
    %c3_i32 = arith.constant 3 : i32
    %22 = arith.addi %21, %c3_i32 : i32
    %23 = arith.index_cast %22 : i32 to index
    %24 = memref.load %arg1[%23] : memref<16xi32, #tpu.memory_space<smem>>
    %25 = arith.index_cast %24 : i32 to index
    %c0_4 = arith.constant 0 : index
    %26 = vector.load %arg2[%25, %c0_4] : memref<64x128xf32, #tpu.memory_space<vmem>>, vector<1x128xf32>
    %27 = arith.addi %0, %2 : i32
    %c4_i32 = arith.constant 4 : i32
    %28 = arith.addi %27, %c4_i32 : i32
    %29 = arith.index_cast %28 : i32 to index
    %30 = memref.load %arg1[%29] : memref<16xi32, #tpu.memory_space<smem>>
    %31 = arith.index_cast %30 : i32 to index
    %c0_5 = arith.constant 0 : index
    %32 = vector.load %arg2[%31, %c0_5] : memref<64x128xf32, #tpu.memory_space<vmem>>, vector<1x128xf32>
    %33 = arith.addi %0, %2 : i32
    %c5_i32 = arith.constant 5 : i32
    %34 = arith.addi %33, %c5_i32 : i32
    %35 = arith.index_cast %34 : i32 to index
    %36 = memref.load %arg1[%35] : memref<16xi32, #tpu.memory_space<smem>>
    %37 = arith.index_cast %36 : i32 to index
    %c0_6 = arith.constant 0 : index
    %38 = vector.load %arg2[%37, %c0_6] : memref<64x128xf32, #tpu.memory_space<vmem>>, vector<1x128xf32>
    %39 = arith.addi %0, %2 : i32
    %c6_i32 = arith.constant 6 : i32
    %40 = arith.addi %39, %c6_i32 : i32
    %41 = arith.index_cast %40 : i32 to index
    %42 = memref.load %arg1[%41] : memref<16xi32, #tpu.memory_space<smem>>
    %43 = arith.index_cast %42 : i32 to index
    %c0_7 = arith.constant 0 : index
    %44 = vector.load %arg2[%43, %c0_7] : memref<64x128xf32, #tpu.memory_space<vmem>>, vector<1x128xf32>
    %45 = arith.addi %0, %2 : i32
    %c7_i32 = arith.constant 7 : i32
    %46 = arith.addi %45, %c7_i32 : i32
    %47 = arith.index_cast %46 : i32 to index
    %48 = memref.load %arg1[%47] : memref<16xi32, #tpu.memory_space<smem>>
    %49 = arith.index_cast %48 : i32 to index
    %c0_8 = arith.constant 0 : index
    %50 = vector.load %arg2[%49, %c0_8] : memref<64x128xf32, #tpu.memory_space<vmem>>, vector<1x128xf32>
    %51 = tpu.concatenate %8, %14, %20, %26, %32, %38, %44, %50 in 0 : vector<1x128xf32>, vector<1x128xf32>, vector<1x128xf32>, vector<1x128xf32>, vector<1x128xf32>, vector<1x128xf32>, vector<1x128xf32>, vector<1x128xf32> -> vector<8x128xf32>
    %cst = arith.constant 11.3137083 : f32
    %52 = vector.broadcast %cst : f32 to vector<8x128xf32>
    %53 = arith.mulf %51, %52 : vector<8x128xf32>
    %54 = arith.index_cast %2 : i32 to index
    %c0_9 = arith.constant 0 : index
    %55 = vector.load %arg3[%54, %c0_9] : memref<8x128xf32, #tpu.memory_space<vmem>>, vector<8x128xf32>
    tpu.vector_store %arg3[%54, %c0_9], %53 {strides = array<i32>} : memref<8x128xf32, #tpu.memory_space<vmem>>, vector<8x128xf32>,
    %c1_i32_10 = arith.constant 1 : i32
    return
  }
  func.func @transform_0(%arg0: i32, %arg1: memref<16xi32, #tpu.memory_space<smem>>) -> (i32, i32) {
    %c0_i32 = arith.constant 0 : i32
    %c0_i32_0 = arith.constant 0 : i32
    %c0_i32_1 = arith.constant 0 : i32
    return %c0_i32, %c0_i32_0 : i32, i32
  }
  func.func @transform_1(%arg0: i32, %arg1: memref<16xi32, #tpu.memory_space<smem>>) -> (i32, i32) {
    %c0_i32 = arith.constant 0 : i32
    %c0_i32_0 = arith.constant 0 : i32
    return %arg0, %c0_i32 : i32, i32
  }
}

</mosaic_0001>

<llo_original>
// kernel: tpu_custom_call.1
$region0: #{tpu_custom_call.1}
  #allocation0 [shape = 'u32[]', space=smem, size = 0x4, offset = 0x4, fixed_abs, tag = 'smem constant byte address 0x4 - core index']
  #allocation1 [shape = 'u32[72,128]{1,0:T(1,128)}', space=vmem, size = 0x9000, scoped, tag = 'internal scratch']
  #allocation2 [shape = 's32[1]{0}', space=sflag, size = 0x4, scoped, tag = 'scoped memory for tpu_custom_call.1']
  #allocation3 [shape = 'u8[512]{0}', space=smem, size = 0x200, scoped, tag = 'prefetched SMEM operand 0']
  %s0 = inlined_call_operand.hbm [shape: s32[16], index: 0, kind: input, shape index: {}]
  %s1 = inlined_call_operand.hbm [shape: f32[64,128], index: 1, kind: input, shape index: {}]
  %s2 = inlined_call_operand.hbm [shape: f32[16,128], index: 2, kind: output, shape index: {}]
  %s3 = sld [smem:[#allocation0]]
  $region41: #{tpu_custom_call.1} parent=0
    _
  %s5 = ssub.s32 1, %s3
  %s6 = scalar_select 0, %s5, %s3
  %s8 = sshll.u32 %s0, 4
  %s9 = int_to_ptr.hbm [resolvable:$true] %s8
  %11 = dma.hbm_to_smem %s9, 16, [#allocation3], [#allocation2]
  %13 = dma.done [#allocation2], 16
  %14 = sfence
  $region1: #{tpu_custom_call.1} parent=0
    #allocation4 [shape = 'u8[32768]{0}', space=vmem, size = 0x8000, scoped, tag = 'input window, operand 1, single buffered']
    #allocation5 [shape = 's32[2]{0}', space=sflag, size = 0x8, scoped, tag = 'scoped memory for tpu_custom_call.1']
    #allocation6 [shape = 's32[2]{0}', space=sflag, size = 0x8, scoped, tag = 'scoped memory for tpu_custom_call.1']
    #allocation7 [shape = 'u8[8192]{0}', space=vmem, size = 0x2000, scoped, tag = 'output window, operand 0']
    %15 = vsyncpa [#allocation5], 0
    %16 = vsyncpa [#allocation6], 0
    %s17 = scalar_lea.sflag [#allocation6], 1
    %18 = vsyncpa %s17, 0
    loop: start=0, step=1, limit=4
    $region2: #{tpu_custom_call.1} parent=1 // loop_pre_header
      _
    $region3: #{tpu_custom_call.1} parent=1 // loop_header
      %s20 = sphi 0, %s24
      %p21 = scmp.ge.s32.totalorder %s20, 4
      %s28 = sphi 0, %s28
      %s30 = sphi 0, %s28
      %s31 = sphi 0, %s30
      %s45 = sphi 0, %s31
      %s51 = sphi 0, %s53
      %s54 = sphi 0, %s51
      %s55 = sphi 0, %s54
      %s71 = sphi 0, %s55
    $region4: #{tpu_custom_call.1} parent=1 // loop_header_branch
      %23 = sbr.rel (%p21) target = $region8
    $region5: #{tpu_custom_call.1} parent=1 // loop_body
      %s25 = ssub.s32 %s20, 1
      %s26 = ssub.s32 %s20, 2
      %s27 = sadd.s32 %s20, 1
      %s29 = sadd.s32 %s28, 1
      %p32 = scmp.eq.s32.totalorder %s20, 1
      %p33 = scmp.ne.s32.totalorder %s28, %s30
      %p34 = scmp.eq.s32.totalorder %s20, 0
      %p35 = por %p33, %p34
      %p36 = scmp.ne.s32.totalorder %s28, %s30
      %p37 = scmp.eq.s32.totalorder %s25, 1
      %p38 = por %p36, %p37
      %p39 = scmp.ne.s32.totalorder %s30, %s31
      %p40 = scmp.eq.s32.totalorder %s25, 0
      %p41 = por %p39, %p40
      %p42 = scmp.ne.s32.totalorder %s30, %s31
      %p43 = scmp.eq.s32.totalorder %s26, 1
      %p44 = por %p42, %p43
      %p46 = scmp.ne.s32.totalorder %s31, %s45
      %p47 = scmp.eq.s32.totalorder %s26, 0
      %p48 = por %p46, %p47
      %s49 = ssub.s32 %s20, %s27
      %p50 = scmp.eq.s32.totalorder %s49, 0
      %s52 = sadd.s32 %s51, 1
      %s53 = scalar_select %p50, %s51, %s52
      %p56 = pneg %p50
      %p57 = scmp.eq.s32.totalorder %s20, 1
      %p58 = por %p56, %p57
      %p59 = scmp.ne.s32.totalorder %s51, %s54
      %p60 = scmp.eq.s32.totalorder %s20, 0
      %p61 = por %p59, %p60
      %p62 = scmp.ne.s32.totalorder %s51, %s54
      %p63 = scmp.eq.s32.totalorder %s25, 1
      %p64 = por %p62, %p63
      %p65 = scmp.ne.s32.totalorder %s54, %s55
      %p66 = scmp.eq.s32.totalorder %s25, 0
      %p67 = por %p65, %p66
      %p68 = scmp.ne.s32.totalorder %s54, %s55
      %p69 = scmp.eq.s32.totalorder %s26, 1
      %p70 = por %p68, %p69
      %p72 = scmp.ne.s32.totalorder %s55, %s71
      %p73 = scmp.eq.s32.totalorder %s26, 0
      %p74 = por %p72, %p73
      %p75 = scmp.le.s32.totalorder 1, %s20
      %p76 = scmp.lt.s32.totalorder %s20, 3
      %p77 = pnand %p75, %p76
      %p78 = pneg %p77
      // Predicated region
      $region9: #{tpu_custom_call.1} parent=5 // pred_check
        _
      $region10: #{tpu_custom_call.1} parent=5 // pred_check_branch
        %80 = sbr.rel (%p77) target = $region12
      $region11: #{tpu_custom_call.1} parent=5 // pred_region
        %s81 = ssub.s32 %s20, 1
        // Predicated region
        $region13: #{tpu_custom_call.1} parent=11 // pred_check
          %p82 = pneg %p41
        $region14: #{tpu_custom_call.1} parent=11 // pred_check_branch
          %84 = sbr.rel (%p82) target = $region16
        $region15: #{tpu_custom_call.1} parent=11 // pred_region
          %86 = vsyncadd [#allocation5], 0
          %s87 = sshll.u32 %s1, 4
          %s88 = int_to_ptr.hbm [resolvable:$true] %s87
          %s89 = sshll.u32 [#allocation4], 4
          %s90 = int_to_ptr.vmem [resolvable:$true] %s89
          %95 = dma.hbm_to_vmem [thread:$0]  %s88, 1024, %s90, [#allocation5], 128, 128, 8
        $region16: #{tpu_custom_call.1} parent=11 // pred_fallthru
          _
      $region12: #{tpu_custom_call.1} parent=5 // pred_fallthru
        _
      %p96 = scmp.lt.s32.totalorder %s20, 2
      // Predicated region
      $region17: #{tpu_custom_call.1} parent=5 // pred_check
        %p97 = pneg %p96
      $region18: #{tpu_custom_call.1} parent=5 // pred_check_branch
        %99 = sbr.rel (%p97) target = $region20
      $region19: #{tpu_custom_call.1} parent=5 // pred_region
        _
      $region20: #{tpu_custom_call.1} parent=5 // pred_fallthru
        _
      %p100 = scmp.le.s32.totalorder 1, %s20
      %p101 = scmp.lt.s32.totalorder %s20, 3
      %p102 = pnand %p100, %p101
      %p103 = pneg %p102
      // Predicated region
      $region21: #{tpu_custom_call.1} parent=5 // pred_check
        _
      $region22: #{tpu_custom_call.1} parent=5 // pred_check_branch
        %105 = sbr.rel (%p102) target = $region24
      $region23: #{tpu_custom_call.1} parent=5 // pred_region
        %s106 = ssub.s32 %s20, 1
        // Predicated region
        $region25: #{tpu_custom_call.1} parent=23 // pred_check
          %p107 = pneg %p41
        $region26: #{tpu_custom_call.1} parent=23 // pred_check_branch
          %109 = sbr.rel (%p107) target = $region28
        $region27: #{tpu_custom_call.1} parent=23 // pred_region
          %111 = dma.done [#allocation5], 1024
        $region28: #{tpu_custom_call.1} parent=23 // pred_fallthru
          _
        %p112 = pneg %p41
        %p113 = pneg %p38
        %p114 = pneg %p67
        %p115 = pneg %p64
        %s116 = sand.u32 %s54, 1
        %s117 = scalar_lea.sflag [#allocation6], %s116
        %s118 = sand.u32 %s54, 1
        %s119 = smul.addr %s118, 8
        %s120 = scalar_lea.vmem [#allocation7], %s119
        %s121 = smul.u32 %s25, 8
        %s122 = sadd.s32 %s121, 0
        %s123 = sld [smem:[#allocation3 + %s122]]
        %s124 = scalar_lea.vmem [#allocation4], %s123
        %v125 = vld [vmem:[%s124] sm:$0x1]
        %s126 = sadd.s32 %s122, 1
        %s127 = sld [smem:[#allocation3 + %s126]]
        %s128 = scalar_lea.vmem [#allocation4], %s127
        %v129 = vld [vmem:[%s128] sm:$0x1]
        %s130 = sadd.s32 %s122, 2
        %s131 = sld [smem:[#allocation3 + %s130]]
        %s132 = scalar_lea.vmem [#allocation4], %s131
        %v133 = vld [vmem:[%s132] sm:$0x1]
        %s134 = sadd.s32 %s122, 3
        %s135 = sld [smem:[#allocation3 + %s134]]
        %s136 = scalar_lea.vmem [#allocation4], %s135
        %v137 = vld [vmem:[%s136] sm:$0x1]
        %s138 = sadd.s32 %s122, 4
        %s139 = sld [smem:[#allocation3 + %s138]]
        %s140 = scalar_lea.vmem [#allocation4], %s139
        %v141 = vld [vmem:[%s140] sm:$0x1]
        %s142 = sadd.s32 %s122, 5
        %s143 = sld [smem:[#allocation3 + %s142]]
        %s144 = scalar_lea.vmem [#allocation4], %s143
        %v145 = vld [vmem:[%s144] sm:$0x1]
        %s146 = sadd.s32 %s122, 6
        %s147 = sld [smem:[#allocation3 + %s146]]
        %s148 = scalar_lea.vmem [#allocation4], %s147
        %v149 = vld [vmem:[%s148] sm:$0x1]
        %s150 = sadd.s32 %s122, 7
        %s151 = sld [smem:[#allocation3 + %s150]]
        %s152 = scalar_lea.vmem [#allocation4], %s151
        %v153 = vld [vmem:[%s152] sm:$0x1]
        %v155 = vrot.slane %v129, 7
        %v158 = vrot.slane %v133, 6
        %v161 = vrot.slane %v137, 5
        %v164 = vrot.slane %v141, 4
        %v167 = vrot.slane %v145, 3
        %v170 = vrot.slane %v149, 2
        %v173 = vrot.slane %v153, 1
        %vm175 = vcmask 1040384
        %v176 = vsel %vm175, %v125, %v155
        %vm177 = vcmask 1041408
        %v178 = vsel %vm177, %v176, %v158
        %vm179 = vcmask 1042432
        %v180 = vsel %vm179, %v178, %v161
        %vm181 = vcmask 1043456
        %v182 = vsel %vm181, %v180, %v164
        %vm183 = vcmask 1044480
        %v184 = vsel %vm183, %v182, %v167
        %vm185 = vcmask 1045504
        %v186 = vsel %vm185, %v184, %v170
        %vm187 = vcmask 1046528
        %v188 = vsel %vm187, %v186, %v173
        %v189 = vmul.f32 %v188, 11.313708
        %190 = vst [vmem:[%s120] sm:$0xff] %v189
        %s191 = sand.u32 %s54, 1
        %s192 = scalar_lea.sflag [#allocation6], %s191
        %s193 = sand.u32 %s54, 1
        %s194 = smul.addr %s193, 8
        %s195 = scalar_lea.vmem [#allocation7], %s194
        // Predicated region
        $region29: #{tpu_custom_call.1} parent=23 // pred_check
          %p196 = pneg %p64
        $region30: #{tpu_custom_call.1} parent=23 // pred_check_branch
          %198 = sbr.rel (%p196) target = $region32
        $region31: #{tpu_custom_call.1} parent=23 // pred_region
          %200 = vsyncadd %s192, 0
          %s201 = smul.addr %s25, 8
          %s202 = scalar_lea.hbm %s2, %s201
          %s204 = sshll.u32 %s195, 4
          %s205 = int_to_ptr.vmem [resolvable:$true] %s204
          %s206 = sshll.u32 %s202, 4
          %s207 = int_to_ptr.hbm [resolvable:$true] %s206
          %209 = dma.vmem_to_hbm [thread:$0]  %s205, 128, %s207, %s192
        $region32: #{tpu_custom_call.1} parent=23 // pred_fallthru
          _
      $region24: #{tpu_custom_call.1} parent=5 // pred_fallthru
        _
      %p210 = scmp.le.s32.totalorder 2, %s20
      // Predicated region
      $region33: #{tpu_custom_call.1} parent=5 // pred_check
        %p211 = pneg %p210
      $region34: #{tpu_custom_call.1} parent=5 // pred_check_branch
        %213 = sbr.rel (%p211) target = $region36
      $region35: #{tpu_custom_call.1} parent=5 // pred_region
        %s214 = ssub.s32 %s20, 2
        // Predicated region
        $region37: #{tpu_custom_call.1} parent=35 // pred_check
          %p215 = pneg %p70
        $region38: #{tpu_custom_call.1} parent=35 // pred_check_branch
          %217 = sbr.rel (%p215) target = $region40
        $region39: #{tpu_custom_call.1} parent=35 // pred_region
          %s218 = sand.u32 %s55, 1
          %s219 = scalar_lea.sflag [#allocation6], %s218
          %s220 = sand.u32 %s55, 1
          %s221 = smul.addr %s220, 8
          %s222 = scalar_lea.vmem [#allocation7], %s221
          %224 = dma.done %s219, 128
        $region40: #{tpu_custom_call.1} parent=35 // pred_fallthru
          _
      $region36: #{tpu_custom_call.1} parent=5 // pred_fallthru
        _
    $region6: #{tpu_custom_call.1} parent=1 // loop_footer
      %s24 = sadd.s32 1, %s20
    $region7: #{tpu_custom_call.1} parent=1 // loop_footer_branch
      %19 = sbr.rel target = $region3
    $region8: #{tpu_custom_call.1} parent=1 // loop_exit
      _
    %225 = vsyncpa [#allocation5], 1
    %s226 = scalar_lea.sflag [#allocation5], 1
    %227 = vsyncpa %s226, 1
    %228 = vsyncpa [#allocation6], 1
    %s229 = scalar_lea.sflag [#allocation6], 1
    %230 = vsyncpa %s229, 1

</llo_original>
